<compile_context>
chip_gen: v5e
topology: v5e:2x2
jax: 0.10.0
libtpu: 0.0.40
codegen_flags: <defaults>
</compile_context>

<pallas_src>
from functools import partial

import jax
import jax.numpy as jnp
from jax.experimental import pallas as pl
from jax.experimental.pallas import tpu as pltpu  # noqa: F401  (kept for TPU-specific tuning hooks)


# ---------------------------------------------------------------------------
# Fused kernel: cosine match + top-S selection + one-hot gather.
#   q:(B,D), k:(P,D), pool_flat:(P, L*D)
#   -> sim:(B,S), idx:(B,S) int32, sel_flat:(B, S*L*D)
# ---------------------------------------------------------------------------
def _prompt_kernel(q_ref, k_ref, pool_ref, sim_ref, idx_ref, sel_ref):
    B, _ = q_ref.shape
    P = k_ref.shape[0]
    S = sim_ref.shape[1]
    F = pool_ref.shape[1]

    q = q_ref[...].astype(jnp.float32)          # (B, D)
    k = k_ref[...].astype(jnp.float32)          # (P, D)
    pool = pool_ref[...]                        # (P, F) resident in VMEM

    # ---- cosine distance -------------------------------------------------
    # Contract the last axes directly so the MXU handles the transpose.
    dots = jax.lax.dot_general(
        q, k, (((1,), (1,)), ((), ())),
        preferred_element_type=jnp.float32)     # (B, P)
    q_sq = jnp.sum(q * q, axis=-1, keepdims=True)        # (B, 1)
    k_sq = jnp.sum(k * k, axis=-1, keepdims=True)        # (P, 1)
    prod_sq = q_sq * k_sq.T                               # (B, P) = (||q||*||k||)^2
    # clamp on the *product* of norms (eps=1e-8 -> eps^2=1e-16), as in
    # torch.nn.functional.cosine_similarity; rsqrt goes to the EUP slot.
    inv = jax.lax.rsqrt(jnp.maximum(prod_sq, jnp.float32(1e-16)))
    match = jnp.float32(1.0) - dots * inv                 # (B, P)

    # ---- top-S smallest (sorted ascending), tie-break to smallest index ---
    p_iota_f = jax.lax.broadcasted_iota(jnp.int32, (B, P), 1).astype(jnp.float32)
    s_iota = jax.lax.broadcasted_iota(jnp.int32, (B, S), 1)
    fmax = jnp.float32(jnp.finfo(jnp.float32).max)

    masked = match
    sim_out = jnp.zeros((B, S), jnp.float32)
    idx_out = jnp.zeros((B, S), jnp.int32)

    for s in range(S):  # S is tiny and static -> fully unrolled
        cur_min = jnp.min(masked, axis=1, keepdims=True)                  # (B, 1)
        is_min = masked == cur_min                                         # (B, P)
        sel_idx_f = jnp.min(jnp.where(is_min, p_iota_f, jnp.float32(P)),
                            axis=1, keepdims=True)                         # (B, 1)
        onehot = p_iota_f == sel_idx_f                                     # (B, P), one True / row

        sim_out = jnp.where(s_iota == s, cur_min, sim_out)
        idx_out = jnp.where(s_iota == s, sel_idx_f.astype(jnp.int32), idx_out)

        # gather of the selected pool rows as a one-hot MXU matmul
        # (exact: 0/1 weights, single nonzero term per output row)
        rows = jnp.dot(onehot.astype(pool.dtype), pool,
                       preferred_element_type=jnp.float32)                 # (B, F)
        sel_ref[:, s * F:(s + 1) * F] = rows.astype(sel_ref.dtype)

        masked = jnp.where(onehot, fmax, masked)                           # remove selected

    sim_ref[...] = sim_out
    idx_ref[...] = idx_out


# ---------------------------------------------------------------------------
# Wrapper reproducing Prompt.forward (eval mode, defaults: s=e=None,
# _diversed_selection=False, _batchwise_selection=False, learnable_mask=None).
# ---------------------------------------------------------------------------
@partial(jax.jit, static_argnames=("selection_size",))
def prompt_forward(query, key, prompts, *, selection_size):
    B, D = query.shape
    P, L, Dp = prompts.shape
    assert D == Dp
    F = L * Dp
    S = selection_size
    pool_flat = prompts.reshape(P, F)  # lane-dense (P, L*D) slab

    sim, topk, sel_flat = pl.pallas_call(
        _prompt_kernel,
        out_shape=(
            jax.ShapeDtypeStruct((B, S), jnp.float32),
            jax.ShapeDtypeStruct((B, S), jnp.int32),
            jax.ShapeDtypeStruct((B, S * F), jnp.float32),
        ),
        in_specs=[
            pl.BlockSpec((B, D), lambda: (0, 0)),
            pl.BlockSpec((P, D), lambda: (0, 0)),
            pl.BlockSpec((P, F), lambda: (0, 0)),
        ],
        out_specs=(
            pl.BlockSpec((B, S), lambda: (0, 0)),
            pl.BlockSpec((B, S), lambda: (0, 0)),
            pl.BlockSpec((B, S * F), lambda: (0, 0)),
        ),
    )(query, key, pool_flat)

    selection = sel_flat.reshape(B, S, L, Dp)

    # counter buffer increment (in-place side effect in torch; returned as glue)
    counter_inc = jnp.zeros((P,), jnp.float32).at[topk.reshape(-1)].add(1.0)

    # TODO(synk): s/e key-range slicing, _diversed_selection (training),
    # _batchwise_selection and learnable_mask branches not implemented
    # (all disabled by the module's defaults / eval mode).
    return sim, selection, topk, counter_inc


# ---------------------------------------------------------------------------
if __name__ == "__main__":
    # Module hyper-parameters (small, consistent with Prompt.__init__)
    pool_size = 8
    selection_size = 4
    prompt_len = 8
    dimention = 32
    B = 2

    rng = jax.random.PRNGKey(0)
    k_q, k_key, k_prompts = jax.random.split(rng, 3)

    # Parameter init matching the module: key, prompts ~ Uniform(-1, 1)
    key_param = jax.random.uniform(
        k_key, (pool_size, dimention), jnp.float32, minval=-1.0, maxval=1.0)
    prompts_param = jax.random.uniform(
        k_prompts, (pool_size, prompt_len, dimention), jnp.float32,
        minval=-1.0, maxval=1.0)
    query = jax.random.normal(k_q, (B, dimention), jnp.float32)

    similarity, selection, topk, counter_inc = jax.block_until_ready(
        prompt_forward(query, key_param, prompts_param,
                       selection_size=selection_size))

    # ---- pure-JAX reference check -----------------------------------------
    qn = jnp.linalg.norm(query, axis=-1, keepdims=True)
    kn = jnp.linalg.norm(key_param, axis=-1, keepdims=True)
    match_ref = 1.0 - (query @ key_param.T) / jnp.maximum(qn * kn.T, 1e-8)
    _, topk_ref = jax.lax.top_k(-match_ref, selection_size)
    sim_ref = jnp.take_along_axis(match_ref, topk_ref, axis=1)
    sel_ref = prompts_param[topk_ref]

    assert similarity.shape == (B, selection_size)
    assert selection.shape == (B, selection_size, prompt_len, dimention)
    assert topk.shape == (B, selection_size)
    assert jnp.array_equal(topk, topk_ref.astype(jnp.int32))
    assert jnp.allclose(similarity, sim_ref, atol=1e-5)
    assert jnp.allclose(similarity,
                        jnp.take_along_axis(match_ref, topk, axis=1), atol=1e-5)
    assert jnp.allclose(selection, sel_ref, atol=1e-6)
    assert bool(jnp.all(jnp.diff(similarity, axis=1) >= -1e-6))  # sorted ascending
    assert int(jnp.sum(counter_inc)) == B * selection_size

    print("KERNEL_OK")
</pallas_src>

<mosaic_0001>
module attributes {stable_mosaic.version = 11 : i64} {
  func.func @_prompt_kernel(%arg0: memref<2x32xf32, #tpu.memory_space<vmem>>, %arg1: memref<8x32xf32, #tpu.memory_space<vmem>>, %arg2: memref<8x256xf32, #tpu.memory_space<vmem>>, %arg3: memref<2x4xf32, #tpu.memory_space<vmem>>, %arg4: memref<2x4xi32, #tpu.memory_space<vmem>>, %arg5: memref<2x1024xf32, #tpu.memory_space<vmem>>) attributes {dimension_semantics = [], scalar_prefetch = 0 : i64, scratch_operands = 0 : i64, tpu.core_type = #tpu.core_type<tc>} {
    %c0 = arith.constant 0 : index
    %c0_0 = arith.constant 0 : index
    %0 = vector.load %arg0[%c0, %c0_0] : memref<2x32xf32, #tpu.memory_space<vmem>>, vector<2x32xf32>
    %c0_1 = arith.constant 0 : index
    %c0_2 = arith.constant 0 : index
    %1 = vector.load %arg1[%c0_1, %c0_2] : memref<8x32xf32, #tpu.memory_space<vmem>>, vector<8x32xf32>
    %c0_3 = arith.constant 0 : index
    %c0_4 = arith.constant 0 : index
    %2 = vector.load %arg2[%c0_3, %c0_4] : memref<8x256xf32, #tpu.memory_space<vmem>>, vector<8x256xf32>
    %cst = arith.constant dense<0.000000e+00> : vector<2x8xf32>
    %3 = tpu.matmul %0, %1, %cst {dimension_numbers = #tpu.dot_dimension_numbers<[1], [1], [0], [0], [0, 0, 1, 0], [], []>} : vector<2x32xf32>, vector<8x32xf32>, vector<2x8xf32> -> vector<2x8xf32>
    %4 = arith.mulf %0, %0 : vector<2x32xf32>
    %cst_5 = arith.constant dense<0.000000e+00> : vector<2xf32>
    %5 = vector.multi_reduction <add>, %4, %cst_5 [1] : vector<2x32xf32> to vector<2xf32>
    %6 = vector.shape_cast %5 : vector<2xf32> to vector<2x1xf32>
    %7 = arith.mulf %1, %1 : vector<8x32xf32>
    %cst_6 = arith.constant dense<0.000000e+00> : vector<8xf32>
    %8 = vector.multi_reduction <add>, %7, %cst_6 [1] : vector<8x32xf32> to vector<8xf32>
    %9 = vector.shape_cast %8 : vector<8xf32> to vector<8x1xf32>
    %10 = tpu.transpose %9, [1, 0] : vector<8x1xf32> -> vector<1x8xf32>
    %11 = vector.broadcast %6 : vector<2x1xf32> to vector<2x8xf32>
    %12 = vector.broadcast %10 : vector<1x8xf32> to vector<2x8xf32>
    %13 = arith.mulf %11, %12 : vector<2x8xf32>
    %cst_7 = arith.constant 1.000000e-16 : f32
    %14 = vector.broadcast %cst_7 : f32 to vector<2x8xf32>
    %15 = arith.maximumf %13, %14 : vector<2x8xf32>
    %16 = math.rsqrt %15 : vector<2x8xf32>
    %17 = arith.mulf %3, %16 : vector<2x8xf32>
    %cst_8 = arith.constant 1.000000e+00 : f32
    %18 = vector.broadcast %cst_8 : f32 to vector<2x8xf32>
    %19 = arith.subf %18, %17 : vector<2x8xf32>
    %20 = tpu.iota {dimensions = array<i32: 1>} : vector<2x8xi32>
    %21 = arith.sitofp %20 : vector<2x8xi32> to vector<2x8xf32>
    %22 = tpu.iota {dimensions = array<i32: 1>} : vector<2x4xi32>
    %cst_9 = arith.constant 0.000000e+00 : f32
    %23 = vector.broadcast %cst_9 : f32 to vector<2x4xf32>
    %c0_i32 = arith.constant 0 : i32
    %24 = vector.broadcast %c0_i32 : i32 to vector<2x4xi32>
    %cst_10 = arith.constant dense<0x7F800000> : vector<2xf32>
    %25 = vector.multi_reduction <minimumf>, %19, %cst_10 [1] : vector<2x8xf32> to vector<2xf32>
    %26 = vector.shape_cast %25 : vector<2xf32> to vector<2x1xf32>
    %27 = vector.broadcast %26 : vector<2x1xf32> to vector<2x8xf32>
    %28 = arith.cmpf oeq, %19, %27 : vector<2x8xf32>
    %cst_11 = arith.constant 8.000000e+00 : f32
    %29 = vector.broadcast %cst_11 : f32 to vector<2x8xf32>
    %30 = arith.select %28, %21, %29 : vector<2x8xi1>, vector<2x8xf32>
    %cst_12 = arith.constant dense<0x7F800000> : vector<2xf32>
    %31 = vector.multi_reduction <minimumf>, %30, %cst_12 [1] : vector<2x8xf32> to vector<2xf32>
    %32 = vector.shape_cast %31 : vector<2xf32> to vector<2x1xf32>
    %33 = vector.broadcast %32 : vector<2x1xf32> to vector<2x8xf32>
    %34 = arith.cmpf oeq, %21, %33 : vector<2x8xf32>
    %c0_i32_13 = arith.constant 0 : i32
    %35 = vector.broadcast %c0_i32_13 : i32 to vector<2x4xi32>
    %36 = arith.cmpi eq, %22, %35 : vector<2x4xi32>
    %37 = vector.shape_cast %26 : vector<2x1xf32> to vector<2x1xf32>
    %38 = vector.broadcast %37 : vector<2x1xf32> to vector<2x4xf32>
    %39 = arith.select %36, %38, %23 : vector<2x4xi1>, vector<2x4xf32>
    %c0_i32_14 = arith.constant 0 : i32
    %40 = vector.broadcast %c0_i32_14 : i32 to vector<2x4xi32>
    %41 = arith.cmpi eq, %22, %40 : vector<2x4xi32>
    %42 = arith.fptosi %32 : vector<2x1xf32> to vector<2x1xi32>
    %43 = vector.shape_cast %42 : vector<2x1xi32> to vector<2x1xi32>
    %44 = vector.broadcast %43 : vector<2x1xi32> to vector<2x4xi32>
    %45 = arith.select %41, %44, %24 : vector<2x4xi1>, vector<2x4xi32>
    %46 = arith.extui %34 : vector<2x8xi1> to vector<2x8xi32>
    %47 = arith.sitofp %46 : vector<2x8xi32> to vector<2x8xf32>
    %cst_15 = arith.constant dense<0.000000e+00> : vector<2x256xf32>
    %48 = tpu.matmul %47, %2, %cst_15 {dimension_numbers = #tpu.dot_dimension_numbers<[1], [0], [0], [1], [0, 0, 1, 1], [], []>} : vector<2x8xf32>, vector<8x256xf32>, vector<2x256xf32> -> vector<2x256xf32>
    %c0_16 = arith.constant 0 : index
    %c0_17 = arith.constant 0 : index
    %49 = vector.load %arg5[%c0_16, %c0_17] : memref<2x1024xf32, #tpu.memory_space<vmem>>, vector<2x256xf32>
    tpu.vector_store %arg5[%c0_16, %c0_17], %48 {strides = array<i32>} : memref<2x1024xf32, #tpu.memory_space<vmem>>, vector<2x256xf32>,
    %cst_18 = arith.constant 3.40282347E+38 : f32
    %50 = vector.broadcast %cst_18 : f32 to vector<2x8xf32>
    %51 = arith.select %34, %50, %19 : vector<2x8xi1>, vector<2x8xf32>
    %cst_19 = arith.constant dense<0x7F800000> : vector<2xf32>
    %52 = vector.multi_reduction <minimumf>, %51, %cst_19 [1] : vector<2x8xf32> to vector<2xf32>
    %53 = vector.shape_cast %52 : vector<2xf32> to vector<2x1xf32>
    %54 = vector.broadcast %53 : vector<2x1xf32> to vector<2x8xf32>
    %55 = arith.cmpf oeq, %51, %54 : vector<2x8xf32>
    %cst_20 = arith.constant 8.000000e+00 : f32
    %56 = vector.broadcast %cst_20 : f32 to vector<2x8xf32>
    %57 = arith.select %55, %21, %56 : vector<2x8xi1>, vector<2x8xf32>
    %cst_21 = arith.constant dense<0x7F800000> : vector<2xf32>
    %58 = vector.multi_reduction <minimumf>, %57, %cst_21 [1] : vector<2x8xf32> to vector<2xf32>
    %59 = vector.shape_cast %58 : vector<2xf32> to vector<2x1xf32>
    %60 = vector.broadcast %59 : vector<2x1xf32> to vector<2x8xf32>
    %61 = arith.cmpf oeq, %21, %60 : vector<2x8xf32>
    %c1_i32 = arith.constant 1 : i32
    %62 = vector.broadcast %c1_i32 : i32 to vector<2x4xi32>
    %63 = arith.cmpi eq, %22, %62 : vector<2x4xi32>
    %64 = vector.shape_cast %53 : vector<2x1xf32> to vector<2x1xf32>
    %65 = vector.broadcast %64 : vector<2x1xf32> to vector<2x4xf32>
    %66 = arith.select %63, %65, %39 : vector<2x4xi1>, vector<2x4xf32>
    %c1_i32_22 = arith.constant 1 : i32
    %67 = vector.broadcast %c1_i32_22 : i32 to vector<2x4xi32>
    %68 = arith.cmpi eq, %22, %67 : vector<2x4xi32>
    %69 = arith.fptosi %59 : vector<2x1xf32> to vector<2x1xi32>
    %70 = vector.shape_cast %69 : vector<2x1xi32> to vector<2x1xi32>
    %71 = vector.broadcast %70 : vector<2x1xi32> to vector<2x4xi32>
    %72 = arith.select %68, %71, %45 : vector<2x4xi1>, vector<2x4xi32>
    %73 = arith.extui %61 : vector<2x8xi1> to vector<2x8xi32>
    %74 = arith.sitofp %73 : vector<2x8xi32> to vector<2x8xf32>
    %cst_23 = arith.constant dense<0.000000e+00> : vector<2x256xf32>
    %75 = tpu.matmul %74, %2, %cst_23 {dimension_numbers = #tpu.dot_dimension_numbers<[1], [0], [0], [1], [0, 0, 1, 1], [], []>} : vector<2x8xf32>, vector<8x256xf32>, vector<2x256xf32> -> vector<2x256xf32>
    %c0_24 = arith.constant 0 : index
    %c256 = arith.constant 256 : index
    %76 = vector.load %arg5[%c0_24, %c256] : memref<2x1024xf32, #tpu.memory_space<vmem>>, vector<2x256xf32>
    tpu.vector_store %arg5[%c0_24, %c256], %75 {strides = array<i32>} : memref<2x1024xf32, #tpu.memory_space<vmem>>, vector<2x256xf32>,
    %cst_25 = arith.constant 3.40282347E+38 : f32
    %77 = vector.broadcast %cst_25 : f32 to vector<2x8xf32>
    %78 = arith.select %61, %77, %51 : vector<2x8xi1>, vector<2x8xf32>
    %cst_26 = arith.constant dense<0x7F800000> : vector<2xf32>
    %79 = vector.multi_reduction <minimumf>, %78, %cst_26 [1] : vector<2x8xf32> to vector<2xf32>
    %80 = vector.shape_cast %79 : vector<2xf32> to vector<2x1xf32>
    %81 = vector.broadcast %80 : vector<2x1xf32> to vector<2x8xf32>
    %82 = arith.cmpf oeq, %78, %81 : vector<2x8xf32>
    %cst_27 = arith.constant 8.000000e+00 : f32
    %83 = vector.broadcast %cst_27 : f32 to vector<2x8xf32>
    %84 = arith.select %82, %21, %83 : vector<2x8xi1>, vector<2x8xf32>
    %cst_28 = arith.constant dense<0x7F800000> : vector<2xf32>
    %85 = vector.multi_reduction <minimumf>, %84, %cst_28 [1] : vector<2x8xf32> to vector<2xf32>
    %86 = vector.shape_cast %85 : vector<2xf32> to vector<2x1xf32>
    %87 = vector.broadcast %86 : vector<2x1xf32> to vector<2x8xf32>
    %88 = arith.cmpf oeq, %21, %87 : vector<2x8xf32>
    %c2_i32 = arith.constant 2 : i32
    %89 = vector.broadcast %c2_i32 : i32 to vector<2x4xi32>
    %90 = arith.cmpi eq, %22, %89 : vector<2x4xi32>
    %91 = vector.shape_cast %80 : vector<2x1xf32> to vector<2x1xf32>
    %92 = vector.broadcast %91 : vector<2x1xf32> to vector<2x4xf32>
    %93 = arith.select %90, %92, %66 : vector<2x4xi1>, vector<2x4xf32>
    %c2_i32_29 = arith.constant 2 : i32
    %94 = vector.broadcast %c2_i32_29 : i32 to vector<2x4xi32>
    %95 = arith.cmpi eq, %22, %94 : vector<2x4xi32>
    %96 = arith.fptosi %86 : vector<2x1xf32> to vector<2x1xi32>
    %97 = vector.shape_cast %96 : vector<2x1xi32> to vector<2x1xi32>
    %98 = vector.broadcast %97 : vector<2x1xi32> to vector<2x4xi32>
    %99 = arith.select %95, %98, %72 : vector<2x4xi1>, vector<2x4xi32>
    %100 = arith.extui %88 : vector<2x8xi1> to vector<2x8xi32>
    %101 = arith.sitofp %100 : vector<2x8xi32> to vector<2x8xf32>
    %cst_30 = arith.constant dense<0.000000e+00> : vector<2x256xf32>
    %102 = tpu.matmul %101, %2, %cst_30 {dimension_numbers = #tpu.dot_dimension_numbers<[1], [0], [0], [1], [0, 0, 1, 1], [], []>} : vector<2x8xf32>, vector<8x256xf32>, vector<2x256xf32> -> vector<2x256xf32>
    %c0_31 = arith.constant 0 : index
    %c512 = arith.constant 512 : index
    %103 = vector.load %arg5[%c0_31, %c512] : memref<2x1024xf32, #tpu.memory_space<vmem>>, vector<2x256xf32>
    tpu.vector_store %arg5[%c0_31, %c512], %102 {strides = array<i32>} : memref<2x1024xf32, #tpu.memory_space<vmem>>, vector<2x256xf32>,
    %cst_32 = arith.constant 3.40282347E+38 : f32
    %104 = vector.broadcast %cst_32 : f32 to vector<2x8xf32>
    %105 = arith.select %88, %104, %78 : vector<2x8xi1>, vector<2x8xf32>
    %cst_33 = arith.constant dense<0x7F800000> : vector<2xf32>
    %106 = vector.multi_reduction <minimumf>, %105, %cst_33 [1] : vector<2x8xf32> to vector<2xf32>
    %107 = vector.shape_cast %106 : vector<2xf32> to vector<2x1xf32>
    %108 = vector.broadcast %107 : vector<2x1xf32> to vector<2x8xf32>
    %109 = arith.cmpf oeq, %105, %108 : vector<2x8xf32>
    %cst_34 = arith.constant 8.000000e+00 : f32
    %110 = vector.broadcast %cst_34 : f32 to vector<2x8xf32>
    %111 = arith.select %109, %21, %110 : vector<2x8xi1>, vector<2x8xf32>
    %cst_35 = arith.constant dense<0x7F800000> : vector<2xf32>
    %112 = vector.multi_reduction <minimumf>, %111, %cst_35 [1] : vector<2x8xf32> to vector<2xf32>
    %113 = vector.shape_cast %112 : vector<2xf32> to vector<2x1xf32>
    %114 = vector.broadcast %113 : vector<2x1xf32> to vector<2x8xf32>
    %115 = arith.cmpf oeq, %21, %114 : vector<2x8xf32>
    %c3_i32 = arith.constant 3 : i32
    %116 = vector.broadcast %c3_i32 : i32 to vector<2x4xi32>
    %117 = arith.cmpi eq, %22, %116 : vector<2x4xi32>
    %118 = vector.shape_cast %107 : vector<2x1xf32> to vector<2x1xf32>
    %119 = vector.broadcast %118 : vector<2x1xf32> to vector<2x4xf32>
    %120 = arith.select %117, %119, %93 : vector<2x4xi1>, vector<2x4xf32>
    %c3_i32_36 = arith.constant 3 : i32
    %121 = vector.broadcast %c3_i32_36 : i32 to vector<2x4xi32>
    %122 = arith.cmpi eq, %22, %121 : vector<2x4xi32>
    %123 = arith.fptosi %113 : vector<2x1xf32> to vector<2x1xi32>
    %124 = vector.shape_cast %123 : vector<2x1xi32> to vector<2x1xi32>
    %125 = vector.broadcast %124 : vector<2x1xi32> to vector<2x4xi32>
    %126 = arith.select %122, %125, %99 : vector<2x4xi1>, vector<2x4xi32>
    %127 = arith.extui %115 : vector<2x8xi1> to vector<2x8xi32>
    %128 = arith.sitofp %127 : vector<2x8xi32> to vector<2x8xf32>
    %cst_37 = arith.constant dense<0.000000e+00> : vector<2x256xf32>
    %129 = tpu.matmul %128, %2, %cst_37 {dimension_numbers = #tpu.dot_dimension_numbers<[1], [0], [0], [1], [0, 0, 1, 1], [], []>} : vector<2x8xf32>, vector<8x256xf32>, vector<2x256xf32> -> vector<2x256xf32>
    %c0_38 = arith.constant 0 : index
    %c768 = arith.constant 768 : index
    %130 = vector.load %arg5[%c0_38, %c768] : memref<2x1024xf32, #tpu.memory_space<vmem>>, vector<2x256xf32>
    tpu.vector_store %arg5[%c0_38, %c768], %129 {strides = array<i32>} : memref<2x1024xf32, #tpu.memory_space<vmem>>, vector<2x256xf32>,
    %c0_39 = arith.constant 0 : index
    %c0_40 = arith.constant 0 : index
    %131 = vector.load %arg3[%c0_39, %c0_40] : memref<2x4xf32, #tpu.memory_space<vmem>>, vector<2x4xf32>
    tpu.vector_store %arg3[%c0_39, %c0_40], %120 {strides = array<i32>} : memref<2x4xf32, #tpu.memory_space<vmem>>, vector<2x4xf32>,
    %c0_41 = arith.constant 0 : index
    %c0_42 = arith.constant 0 : index
    %132 = vector.load %arg4[%c0_41, %c0_42] : memref<2x4xi32, #tpu.memory_space<vmem>>, vector<2x4xi32>
    tpu.vector_store %arg4[%c0_41, %c0_42], %126 {strides = array<i32>} : memref<2x4xi32, #tpu.memory_space<vmem>>, vector<2x4xi32>,
    return
  }
}

</mosaic_0001>

<llo_original>
// kernel: prompt_forward.1
$region0: #{prompt_forward.1}
  #allocation0 [shape = 'u32[]', space=smem, size = 0x4, offset = 0x4, fixed_abs, tag = 'smem constant byte address 0x4 - core index']
  #allocation1 [shape = 'u32[72,128]{1,0:T(1,128)}', space=vmem, size = 0x9000, scoped, tag = 'internal scratch']
  %s0 = inlined_call_operand.vmem [shape: f32[2,32], index: 0, kind: input, shape index: {}]
  %s1 = inlined_call_operand.vmem [shape: f32[8,32], index: 1, kind: input, shape index: {}]
  %s2 = inlined_call_operand.vmem [shape: f32[8,256], index: 2, kind: input, shape index: {}]
  %s3 = inlined_call_operand.hbm [shape: f32[2,4], index: 3, kind: output, shape index: {0}]
  %s4 = inlined_call_operand.vmem [shape: s32[2,4], index: 4, kind: output, shape index: {1}]
  %s5 = inlined_call_operand.vmem [shape: f32[2,1024], index: 5, kind: output, shape index: {2}]
  %6 = xla_tuple %s3, %s4, %s5
  %s7 = sld [smem:[#allocation0]]
  $region38: #{prompt_forward.1} parent=0
    _
  %s9 = ssub.s32 1, %s7
  %s10 = scalar_select 0, %s9, %s7
  $region1: #{prompt_forward.1} parent=0
    #allocation2 [shape = 'u8[1024]{0}', space=vmem, size = 0x400, scoped, tag = 'output window, operand 0, single buffered']
    #allocation3 [shape = 's32[1]{0}', space=sflag, size = 0x4, scoped, tag = 'scoped memory for prompt_forward.1']
    %11 = vsyncpa [#allocation3], 0
    // Predicated region
    $region2: #{prompt_forward.1} parent=1 // pred_check
      _
    $region3: #{prompt_forward.1} parent=1 // pred_check_branch
      %13 = sbr.rel (0) target = $region5
    $region4: #{prompt_forward.1} parent=1 // pred_region
      _
    $region5: #{prompt_forward.1} parent=1 // pred_fallthru
      _
    // Predicated region
    $region6: #{prompt_forward.1} parent=1 // pred_check
      _
    $region7: #{prompt_forward.1} parent=1 // pred_check_branch
      %15 = sbr.rel (0) target = $region9
    $region8: #{prompt_forward.1} parent=1 // pred_region
      _
    $region9: #{prompt_forward.1} parent=1 // pred_fallthru
      _
    // Predicated region
    $region10: #{prompt_forward.1} parent=1 // pred_check
      _
    $region11: #{prompt_forward.1} parent=1 // pred_check_branch
      %17 = sbr.rel (0) target = $region13
    $region12: #{prompt_forward.1} parent=1 // pred_region
      _
    $region13: #{prompt_forward.1} parent=1 // pred_fallthru
      _
    %v18 = vld [vmem:[%s0] sm:$0x3]
    %v19 = vld [vmem:[%s1] sm:$0xff]
    %v20 = vld [vmem:[%s2] sm:$0xff]
    %v21 = vld [vmem:[%s2 + $0x8] sm:$0xff]
    %vm22 = vcmask 261120
    %v24 = vsel %vm22, %v18, 0
    %v27 = vsel %vm22, %v19, 0
    %29 = vmatpush.xpose.msra.mxu0 0.0
    %30 = vmatpush.xpose.msra.mxu0 0.0
    %31 = vmatpush.xpose.msra.mxu0 0.0
    %32 = vmatpush.xpose.msra.mxu0 0.0
    %33 = vmatpush.xpose.msra.mxu0 0.0
    %34 = vmatpush.xpose.msra.mxu0 0.0
    %35 = vmatpush.xpose.msra.mxu0 0.0
    %36 = vmatpush.xpose.msra.mxu0 0.0
    %37 = vmatpush.xpose.msra.mxu0 0.0
    %38 = vmatpush.xpose.msra.mxu0 0.0
    %39 = vmatpush.xpose.msra.mxu0 0.0
    %40 = vmatpush.xpose.msra.mxu0 0.0
    %41 = vmatpush.xpose.msra.mxu0 0.0
    %42 = vmatpush.xpose.msra.mxu0 0.0
    %43 = vmatpush.xpose.msra.mxu0 0.0
    %44 = vmatpush.xpose.msra.mxu0 %v27
    %45 = vmatmul.f32.gmra.mxu0 %v24
    %v46 = vpop.f32.mrf.mxu0
    %v47 = vadd.f32 0.0, %v46
    %48 = vdwg.mxu0
    %v49 = vmul.f32 %v18, %v18
    %vm50 = vcmask 254976
    %v51 = vsel %vm50, %v49, 0.0
    %52 = vadd.xlane.f32.xlu0 %v51
    %v53 = vpop.xlane.xlu0 %52
    %v54 = vmul.f32 %v19, %v19
    %v55 = vsel %vm22, %v54, 0.0
    %56 = vadd.xlane.f32.xlu0 %v55
    %v57 = vpop.xlane.xlu0 %56
    %58 = vxpose.xlu0.b32.start [1/16] %v57, 128
    %59 = vxpose.xlu0.b32.cont [2/16] 0.0, 128
    %60 = vxpose.xlu0.b32.cont [3/16] 0.0, 128
    %61 = vxpose.xlu0.b32.cont [4/16] 0.0, 128
    %62 = vxpose.xlu0.b32.cont [5/16] 0.0, 128
    %63 = vxpose.xlu0.b32.cont [6/16] 0.0, 128
    %64 = vxpose.xlu0.b32.cont [7/16] 0.0, 128
    %65 = vxpose.xlu0.b32.cont [8/16] 0.0, 128
    %66 = vxpose.xlu0.b32.cont [9/16] 0.0, 128
    %67 = vxpose.xlu0.b32.cont [10/16] 0.0, 128
    %68 = vxpose.xlu0.b32.cont [11/16] 0.0, 128
    %69 = vxpose.xlu0.b32.cont [12/16] 0.0, 128
    %70 = vxpose.xlu0.b32.cont [13/16] 0.0, 128
    %71 = vxpose.xlu0.b32.cont [14/16] 0.0, 128
    %72 = vxpose.xlu0.b32.cont [15/16] 0.0, 128
    %73 = vxpose.xlu0.b32.end [16/16] 0.0, 128
    %v74 = vpop.trf.xlu0
    %v75 = vpop.trf.xlu0
    %v76 = vpop.trf.xlu0
    %v77 = vpop.trf.xlu0
    %v78 = vpop.trf.xlu0
    %v79 = vpop.trf.xlu0
    %v80 = vpop.trf.xlu0
    %v81 = vpop.trf.xlu0
    %v82 = vpop.trf.xlu0
    %v83 = vpop.trf.xlu0
    %v84 = vpop.trf.xlu0
    %v85 = vpop.trf.xlu0
    %v86 = vpop.trf.xlu0
    %v87 = vpop.trf.xlu0
    %v88 = vpop.trf.xlu0
    %v89 = vpop.trf.xlu0
    %v90 = vperm.slane %v74, 0
    %v91 = vmul.f32 %v53, %v90
    %v92 = vmax.f32 %v91, 1e-16
    %v93 = vrsqrt.pop %v92
    %v94 = vmul.f32 %v93, %v92
    %v95 = vmul.f32 %v94, %v93
    %v96 = vmul.f32 0.5, %v95
    %v97 = vsub.f32 1.5, %v96
    %v98 = vmul.f32 %v93, %v97
    %vm99 = vweird.f32 %v92
    %vm100 = vweird.f32 %v93
    %vm101 = vmor %vm99, %vm100
    %v102 = vsel %vm101, %v93, %v98
    %v103 = vmul.f32 %v47, %v102
    %v104 = vsub.f32 1.0, %v103
    %v105 = vlaneseq
    %v106 = vand.u32 %v105, 127
    %v107 = vcvt.s32.f32 %v106
    %vm108 = vcmask 58368
    %v109 = vsel %vm108, %v104, inf
    %110 = vmin.xlane.f32.xlu0 %v109
    %v111 = vpop.xlane.xlu0 %110
    %vm112 = vcmp.eq.f32.partialorder %v104, %v111
    %v113 = vsel %vm112, %v107, 8.0
    %v114 = vsel %vm108, %v113, inf
    %115 = vmin.xlane.f32.xlu0 %v114
    %v116 = vpop.xlane.xlu0 %115
    %vm117 = vcmp.eq.f32.partialorder %v107, %v116
    %vm118 = vcmp.eq.s32.totalorder %v106, 0
    %v119 = vsel %vm118, %v111, 0.0
    %v120 = vcvt.f32.s32.to.zero.pseudo %v116
    %v121 = vsel %vm118, %v120, 0
    %v122 = vsel %vm117, 1, 0
    %v123 = vcvt.s32.f32 %v122
    %vm124 = vcmask 64512
    %v126 = vsel %vm124, %v123, 0
    %128 = vmatpush.msra.mxu0 0.0
    %129 = vmatpush.msra.mxu0 0.0
    %130 = vmatpush.msra.mxu0 0.0
    %131 = vmatpush.msra.mxu0 0.0
    %132 = vmatpush.msra.mxu0 0.0
    %133 = vmatpush.msra.mxu0 0.0
    %134 = vmatpush.msra.mxu0 0.0
    %135 = vmatpush.msra.mxu0 0.0
    %136 = vmatpush.msra.mxu0 0.0
    %137 = vmatpush.msra.mxu0 0.0
    %138 = vmatpush.msra.mxu0 0.0
    %139 = vmatpush.msra.mxu0 0.0
    %140 = vmatpush.msra.mxu0 0.0
    %141 = vmatpush.msra.mxu0 0.0
    %142 = vmatpush.msra.mxu0 0.0
    %143 = vmatpush.msra.mxu0 %v20
    %144 = vmatmul.f32.gmra.mxu0 %v126
    %v145 = vpop.f32.mrf.mxu0
    %v146 = vadd.f32 0.0, %v145
    %147 = vdwg.mxu0
    %148 = vmatpush.msra.mxu0 0.0
    %149 = vmatpush.msra.mxu0 0.0
    %150 = vmatpush.msra.mxu0 0.0
    %151 = vmatpush.msra.mxu0 0.0
    %152 = vmatpush.msra.mxu0 0.0
    %153 = vmatpush.msra.mxu0 0.0
    %154 = vmatpush.msra.mxu0 0.0
    %155 = vmatpush.msra.mxu0 0.0
    %156 = vmatpush.msra.mxu0 0.0
    %157 = vmatpush.msra.mxu0 0.0
    %158 = vmatpush.msra.mxu0 0.0
    %159 = vmatpush.msra.mxu0 0.0
    %160 = vmatpush.msra.mxu0 0.0
    %161 = vmatpush.msra.mxu0 0.0
    %162 = vmatpush.msra.mxu0 0.0
    %163 = vmatpush.msra.mxu0 %v21
    %164 = vmatmul.f32.gmra.mxu0 %v126
    %v165 = vpop.f32.mrf.mxu0
    %v166 = vadd.f32 0.0, %v165
    %167 = vdwg.mxu0
    %v170 = vrot.slane %v166, 6
    %vm171 = vcmask 1041408
    %v172 = vsel %vm171, %v146, %v170
    %174 = vst [vmem:[%s5] sm:$0xf] %v172
    %v175 = vsel %vm117, 3.4028235e+38, %v104
    %v176 = vsel %vm108, %v175, inf
    %177 = vmin.xlane.f32.xlu0 %v176
    %v178 = vpop.xlane.xlu0 %177
    %vm179 = vcmp.eq.f32.partialorder %v175, %v178
    %v180 = vsel %vm179, %v107, 8.0
    %v181 = vsel %vm108, %v180, inf
    %182 = vmin.xlane.f32.xlu0 %v181
    %v183 = vpop.xlane.xlu0 %182
    %vm184 = vcmp.eq.f32.partialorder %v107, %v183
    %vm185 = vcmp.eq.s32.totalorder %v106, 1
    %v186 = vsel %vm185, %v178, %v119
    %v187 = vcvt.f32.s32.to.zero.pseudo %v183
    %v188 = vsel %vm185, %v187, %v121
    %v189 = vsel %vm184, 1, 0
    %v190 = vcvt.s32.f32 %v189
    %v192 = vsel %vm124, %v190, 0
    %194 = vmatpush.msra.mxu0 0.0
    %195 = vmatpush.msra.mxu0 0.0
    %196 = vmatpush.msra.mxu0 0.0
    %197 = vmatpush.msra.mxu0 0.0
    %198 = vmatpush.msra.mxu0 0.0
    %199 = vmatpush.msra.mxu0 0.0
    %200 = vmatpush.msra.mxu0 0.0
    %201 = vmatpush.msra.mxu0 0.0
    %202 = vmatpush.msra.mxu0 0.0
    %203 = vmatpush.msra.mxu0 0.0
    %204 = vmatpush.msra.mxu0 0.0
    %205 = vmatpush.msra.mxu0 0.0
    %206 = vmatpush.msra.mxu0 0.0
    %207 = vmatpush.msra.mxu0 0.0
    %208 = vmatpush.msra.mxu0 0.0
    %209 = vmatpush.msra.mxu0 %v20
    %210 = vmatmul.f32.gmra.mxu0 %v192
    %v211 = vpop.f32.mrf.mxu0
    %v212 = vadd.f32 0.0, %v211
    %213 = vdwg.mxu0
    %214 = vmatpush.msra.mxu0 0.0
    %215 = vmatpush.msra.mxu0 0.0
    %216 = vmatpush.msra.mxu0 0.0
    %217 = vmatpush.msra.mxu0 0.0
    %218 = vmatpush.msra.mxu0 0.0
    %219 = vmatpush.msra.mxu0 0.0
    %220 = vmatpush.msra.mxu0 0.0
    %221 = vmatpush.msra.mxu0 0.0
    %222 = vmatpush.msra.mxu0 0.0
    %223 = vmatpush.msra.mxu0 0.0
    %224 = vmatpush.msra.mxu0 0.0
    %225 = vmatpush.msra.mxu0 0.0
    %226 = vmatpush.msra.mxu0 0.0
    %227 = vmatpush.msra.mxu0 0.0
    %228 = vmatpush.msra.mxu0 0.0
    %229 = vmatpush.msra.mxu0 %v21
    %230 = vmatmul.f32.gmra.mxu0 %v192
    %v231 = vpop.f32.mrf.mxu0
    %v232 = vadd.f32 0.0, %v231
    %233 = vdwg.mxu0
    %v236 = vrot.slane %v232, 6
    %v237 = vsel %vm171, %v212, %v236
    %239 = vst [vmem:[%s5 + $0x4] sm:$0xf] %v237
    %v240 = vsel %vm184, 3.4028235e+38, %v175
    %v241 = vsel %vm108, %v240, inf
    %242 = vmin.xlane.f32.xlu0 %v241
    %v243 = vpop.xlane.xlu0 %242
    %vm244 = vcmp.eq.f32.partialorder %v240, %v243
    %v245 = vsel %vm244, %v107, 8.0
    %v246 = vsel %vm108, %v245, inf
    %247 = vmin.xlane.f32.xlu0 %v246
    %v248 = vpop.xlane.xlu0 %247
    %vm249 = vcmp.eq.f32.partialorder %v107, %v248
    %vm250 = vcmp.eq.s32.totalorder %v106, 2
    %v251 = vsel %vm250, %v243, %v186
    %v252 = vcvt.f32.s32.to.zero.pseudo %v248
    %v253 = vsel %vm250, %v252, %v188
    %v254 = vsel %vm249, 1, 0
    %v255 = vcvt.s32.f32 %v254
    %v257 = vsel %vm124, %v255, 0
    %259 = vmatpush.msra.mxu0 0.0
    %260 = vmatpush.msra.mxu0 0.0
    %261 = vmatpush.msra.mxu0 0.0
    %262 = vmatpush.msra.mxu0 0.0
    %263 = vmatpush.msra.mxu0 0.0
    %264 = vmatpush.msra.mxu0 0.0
    %265 = vmatpush.msra.mxu0 0.0
    %266 = vmatpush.msra.mxu0 0.0
    %267 = vmatpush.msra.mxu0 0.0
    %268 = vmatpush.msra.mxu0 0.0
    %269 = vmatpush.msra.mxu0 0.0
    %270 = vmatpush.msra.mxu0 0.0
    %271 = vmatpush.msra.mxu0 0.0
    %272 = vmatpush.msra.mxu0 0.0
    %273 = vmatpush.msra.mxu0 0.0
    %274 = vmatpush.msra.mxu0 %v20
    %275 = vmatmul.f32.gmra.mxu0 %v257
    %v276 = vpop.f32.mrf.mxu0
    %v277 = vadd.f32 0.0, %v276
    %278 = vdwg.mxu0
    %279 = vmatpush.msra.mxu0 0.0
    %280 = vmatpush.msra.mxu0 0.0
    %281 = vmatpush.msra.mxu0 0.0
    %282 = vmatpush.msra.mxu0 0.0
    %283 = vmatpush.msra.mxu0 0.0
    %284 = vmatpush.msra.mxu0 0.0
    %285 = vmatpush.msra.mxu0 0.0
    %286 = vmatpush.msra.mxu0 0.0
    %287 = vmatpush.msra.mxu0 0.0
    %288 = vmatpush.msra.mxu0 0.0
    %289 = vmatpush.msra.mxu0 0.0
    %290 = vmatpush.msra.mxu0 0.0
    %291 = vmatpush.msra.mxu0 0.0
    %292 = vmatpush.msra.mxu0 0.0
    %293 = vmatpush.msra.mxu0 0.0
    %294 = vmatpush.msra.mxu0 %v21
    %295 = vmatmul.f32.gmra.mxu0 %v257
    %v296 = vpop.f32.mrf.mxu0
    %v297 = vadd.f32 0.0, %v296
    %298 = vdwg.mxu0
    %v301 = vrot.slane %v297, 6
    %v302 = vsel %vm171, %v277, %v301
    %304 = vst [vmem:[%s5 + $0x8] sm:$0xf] %v302
    %v305 = vsel %vm249, 3.4028235e+38, %v240
    %v306 = vsel %vm108, %v305, inf
    %307 = vmin.xlane.f32.xlu0 %v306
    %v308 = vpop.xlane.xlu0 %307
    %vm309 = vcmp.eq.f32.partialorder %v305, %v308
    %v310 = vsel %vm309, %v107, 8.0
    %v311 = vsel %vm108, %v310, inf
    %312 = vmin.xlane.f32.xlu0 %v311
    %v313 = vpop.xlane.xlu0 %312
    %vm314 = vcmp.eq.f32.partialorder %v107, %v313
    %vm315 = vcmp.eq.s32.totalorder %v106, 3
    %v316 = vsel %vm315, %v308, %v251
    %v317 = vcvt.f32.s32.to.zero.pseudo %v313
    %v318 = vsel %vm315, %v317, %v253
    %v319 = vsel %vm314, 1, 0
    %v320 = vcvt.s32.f32 %v319
    %v322 = vsel %vm124, %v320, 0
    %324 = vmatpush.msra.mxu0 0.0
    %325 = vmatpush.msra.mxu0 0.0
    %326 = vmatpush.msra.mxu0 0.0
    %327 = vmatpush.msra.mxu0 0.0
    %328 = vmatpush.msra.mxu0 0.0
    %329 = vmatpush.msra.mxu0 0.0
    %330 = vmatpush.msra.mxu0 0.0
    %331 = vmatpush.msra.mxu0 0.0
    %332 = vmatpush.msra.mxu0 0.0
    %333 = vmatpush.msra.mxu0 0.0
    %334 = vmatpush.msra.mxu0 0.0
    %335 = vmatpush.msra.mxu0 0.0
    %336 = vmatpush.msra.mxu0 0.0
    %337 = vmatpush.msra.mxu0 0.0
    %338 = vmatpush.msra.mxu0 0.0
    %339 = vmatpush.msra.mxu0 %v20
    %340 = vmatmul.f32.gmra.mxu0 %v322
    %v341 = vpop.f32.mrf.mxu0
    %v342 = vadd.f32 0.0, %v341
    %343 = vdwg.mxu0
    %344 = vmatpush.msra.mxu0 0.0
    %345 = vmatpush.msra.mxu0 0.0
    %346 = vmatpush.msra.mxu0 0.0
    %347 = vmatpush.msra.mxu0 0.0
    %348 = vmatpush.msra.mxu0 0.0
    %349 = vmatpush.msra.mxu0 0.0
    %350 = vmatpush.msra.mxu0 0.0
    %351 = vmatpush.msra.mxu0 0.0
    %352 = vmatpush.msra.mxu0 0.0
    %353 = vmatpush.msra.mxu0 0.0
    %354 = vmatpush.msra.mxu0 0.0
    %355 = vmatpush.msra.mxu0 0.0
    %356 = vmatpush.msra.mxu0 0.0
    %357 = vmatpush.msra.mxu0 0.0
    %358 = vmatpush.msra.mxu0 0.0
    %359 = vmatpush.msra.mxu0 %v21
    %360 = vmatmul.f32.gmra.mxu0 %v322
    %v361 = vpop.f32.mrf.mxu0
    %v362 = vadd.f32 0.0, %v361
    %363 = vdwg.mxu0
    %v366 = vrot.slane %v362, 6
    %v367 = vsel %vm171, %v342, %v366
    %369 = vst [vmem:[%s5 + $0xc] sm:$0xf] %v367
    %vm370 = vcmask 25600
    %371 = vst.msk [vmem:[#allocation2] sm:$0x3] %vm370, %v316
    %372 = vst.msk [vmem:[%s4] sm:$0x3] %vm370, %v318
    // Predicated region
    $region14: #{prompt_forward.1} parent=1 // pred_check
      _
    $region15: #{prompt_forward.1} parent=1 // pred_check_branch
      %374 = sbr.rel (0) target = $region17
    $region16: #{prompt_forward.1} parent=1 // pred_region
      %376 = vsyncadd [#allocation3], 0
      %s378 = sshll.u32 [#allocation2], 4
      %s379 = int_to_ptr.vmem [resolvable:$true] %s378
      %s380 = sshll.u32 %s3, 4
      %s381 = int_to_ptr.hbm [resolvable:$true] %s380
      %383 = dma.vmem_to_hbm [thread:$0]  %s379, 32, %s381, [#allocation3]
    $region17: #{prompt_forward.1} parent=1 // pred_fallthru
      _
    // Predicated region
    $region18: #{prompt_forward.1} parent=1 // pred_check
      _
    $region19: #{prompt_forward.1} parent=1 // pred_check_branch
      %385 = sbr.rel (0) target = $region21
    $region20: #{prompt_forward.1} parent=1 // pred_region
      _
    $region21: #{prompt_forward.1} parent=1 // pred_fallthru
      _
    // Predicated region
    $region22: #{prompt_forward.1} parent=1 // pred_check
      _
    $region23: #{prompt_forward.1} parent=1 // pred_check_branch
      %387 = sbr.rel (0) target = $region25
    $region24: #{prompt_forward.1} parent=1 // pred_region
      _
    $region25: #{prompt_forward.1} parent=1 // pred_fallthru
      _
    // Predicated region
    $region26: #{prompt_forward.1} parent=1 // pred_check
      _
    $region27: #{prompt_forward.1} parent=1 // pred_check_branch
      %389 = sbr.rel (0) target = $region29
    $region28: #{prompt_forward.1} parent=1 // pred_region
      %391 = dma.done [#allocation3], 32
    $region29: #{prompt_forward.1} parent=1 // pred_fallthru
      _
    // Predicated region
    $region30: #{prompt_forward.1} parent=1 // pred_check
      _
    $region31: #{prompt_forward.1} parent=1 // pred_check_branch
      %393 = sbr.rel (0) target = $region33
    $region32: #{prompt_forward.1} parent=1 // pred_region
      _
    $region33: #{prompt_forward.1} parent=1 // pred_fallthru
      _
    // Predicated region
    $region34: #{prompt_forward.1} parent=1 // pred_check
      _
    $region35: #{prompt_forward.1} parent=1 // pred_check_branch
      %395 = sbr.rel (0) target = $region37
    $region36: #{prompt_forward.1} parent=1 // pred_region
      _
    $region37: #{prompt_forward.1} parent=1 // pred_fallthru
      _
    %396 = vsyncpa [#allocation3], 1

</llo_original>
